<compile_context>
chip_gen: v7x
topology: tpu7x:2x2x1
jax: 0.10.0
libtpu: 0.0.40
codegen_flags: <defaults>
</compile_context>

<pallas_src>
import functools

import jax
import jax.numpy as jnp
from jax.experimental import pallas as pl
from jax.experimental.pallas import tpu as pltpu


def _round_up(x, n):
    return ((x + n - 1) // n) * n


_SMALL_C_MAX = 8  # use the lane-dense path when the class count is this small


# --------------------------------------------------------------------------
# Kernel 1: small C (e.g. AASIST2 C=2). Layout (C, N): batch on the lane axis.
# --------------------------------------------------------------------------
def _amsoftmax_lanes_kernel(cos_ref, lab_ref, out_ref, *, s, m, n_valid,
                            tile_n, num_classes):
    i = pl.program_id(0)
    cos = cos_ref[...].astype(jnp.float32)        # (C, TN)
    lab = lab_ref[...]                            # (1, TN) int32

    # Literal module semantics: margin shifts every logit (see header comment).
    z = s * (cos - m)                             # (C, TN)

    # Unrolled over the small static class axis: all (1, TN) lane-dense
    # elementwise work (VPU/EUP), no cross-lane reduction for the softmax.
    mx = z[0:1, :]
    for c in range(1, num_classes):
        mx = jnp.maximum(mx, z[c:c + 1, :])
    sum_exp = jnp.zeros_like(mx)
    target = jnp.zeros_like(mx)
    for c in range(num_classes):
        zc = z[c:c + 1, :]
        sum_exp = sum_exp + jnp.exp(zc - mx)
        target = target + jnp.where(lab == c, zc, 0.0)
    lse = mx + jnp.log(sum_exp)
    nll = lse - target                            # (1, TN)

    # Mask lanes that belong to batch padding.
    col = i * tile_n + jax.lax.broadcasted_iota(jnp.int32, nll.shape, 1)
    nll = jnp.where(col < n_valid, nll, 0.0)

    tile_sum = jnp.sum(nll, axis=1, keepdims=True)            # (1, 1)
    out_ref[...] = jnp.broadcast_to(tile_sum, out_ref.shape)  # lane-dense store


# --------------------------------------------------------------------------
# Kernel 2: general C. Layout (B, C): classes on lanes, batch tiled on sublanes.
# --------------------------------------------------------------------------
def _amsoftmax_rows_kernel(cos_ref, lab_ref, out_ref, *, s, m, n_valid, tile_b):
    i = pl.program_id(0)
    cos = cos_ref[...].astype(jnp.float32)        # (TB, C)
    lab = lab_ref[...]                            # (TB, 1) int32

    z = s * (cos - m)                             # literal module semantics

    mx = jnp.max(z, axis=1, keepdims=True)                            # (TB, 1)
    lse = mx + jnp.log(jnp.sum(jnp.exp(z - mx), axis=1, keepdims=True))

    # Target logit without materializing a float one-hot or log-prob matrix.
    col = jax.lax.broadcasted_iota(jnp.int32, z.shape, 1)
    target = jnp.sum(jnp.where(col == lab, z, 0.0), axis=1, keepdims=True)

    nll = lse - target                                                # (TB, 1)

    # Mask rows of a ragged (overhanging) final batch tile.
    row = i * tile_b + jax.lax.broadcasted_iota(jnp.int32, nll.shape, 0)
    nll = jnp.where(row < n_valid, nll, 0.0)

    tile_sum = jnp.sum(nll, axis=0, keepdims=True)             # (1, 1)
    out_ref[...] = jnp.broadcast_to(tile_sum, out_ref.shape)


# --------------------------------------------------------------------------
# Wrappers
# --------------------------------------------------------------------------
def _amsoftmax_small_c(cosine, labels, s, m, block_batch):
    B, C = cosine.shape
    itemsize = jnp.dtype(cosine.dtype).itemsize
    if block_batch is None:
        block_batch = 32768
    # Lane-multiple tile, never larger than the (lane-rounded) batch itself.
    tile_n = min(_round_up(block_batch, 128), _round_up(B, 128))
    n_pad = _round_up(B, tile_n)
    g = n_pad // tile_n

    # Lane-dense layout: classes on sublanes, batch on the 128-wide lane axis.
    cos_t = jnp.pad(cosine.T, ((0, 0), (0, n_pad - B)))
    lab_t = jnp.pad(labels, (0, n_pad - B)).reshape(1, n_pad)

    kernel = functools.partial(_amsoftmax_lanes_kernel, s=s, m=m, n_valid=B,
                               tile_n=tile_n, num_classes=C)
    cost = pl.CostEstimate(
        flops=6 * B * C,
        transcendentals=B * (C + 1),
        bytes_accessed=B * C * itemsize + B * 4 + g * 128 * 4)

    partial_sums = pl.pallas_call(
        kernel,
        out_shape=jax.ShapeDtypeStruct((1, 128 * g), jnp.float32),
        grid=(g,),
        in_specs=[
            pl.BlockSpec((C, tile_n), lambda i: (0, i)),
            pl.BlockSpec((1, tile_n), lambda i: (0, i)),
        ],
        out_specs=pl.BlockSpec((1, 128), lambda i: (0, i)),
        compiler_params=pltpu.CompilerParams(
            dimension_semantics=("parallel",)),
        cost_estimate=cost,
    )(cos_t, lab_t)

    # Each tile replicated its partial sum across its 128 output lanes.
    return jnp.sum(partial_sums.reshape(g, 128)[:, 0]) / B


def _amsoftmax_general(cosine, labels, s, m, block_batch):
    B, C = cosine.shape
    itemsize = jnp.dtype(cosine.dtype).itemsize
    if block_batch is None:
        # Keep 2 (double-buffer) x tile_b x C x itemsize comfortably inside the
        # smallest default scoped-VMEM budget (16 MiB on v5e).
        block_batch = max(16, min(512, (4 * 1024 * 1024) // max(C * itemsize, 1)))
    tile_b = min(block_batch, _round_up(B, 16))
    tile_b = max(16, _round_up(tile_b, 16))
    g = -(-B // tile_b)

    labels2d = labels.reshape(B, 1)
    kernel = functools.partial(_amsoftmax_rows_kernel, s=s, m=m, n_valid=B,
                               tile_b=tile_b)
    cost = pl.CostEstimate(
        flops=6 * B * C,
        transcendentals=B * (C + 1),
        bytes_accessed=B * C * itemsize + B * 4 + g * 128 * 4)

    partial_sums = pl.pallas_call(
        kernel,
        out_shape=jax.ShapeDtypeStruct((1, 128 * g), jnp.float32),
        grid=(g,),
        in_specs=[
            pl.BlockSpec((tile_b, C), lambda i: (i, 0)),
            pl.BlockSpec((tile_b, 1), lambda i: (i, 0)),
        ],
        out_specs=pl.BlockSpec((1, 128), lambda i: (0, i)),
        compiler_params=pltpu.CompilerParams(
            dimension_semantics=("parallel",)),
        cost_estimate=cost,
    )(cosine, labels2d)

    return jnp.sum(partial_sums.reshape(g, 128)[:, 0]) / B


def amsoftmax_loss(cosine, labels, *, s=30.0, m=0.4, block_batch=None):
    """cosine: (B, C) float (f32 or bf16), labels: (B,) int -> scalar f32 loss."""
    B, C = cosine.shape
    labels = labels.astype(jnp.int32)
    if C <= _SMALL_C_MAX:
        return _amsoftmax_small_c(cosine, labels, float(s), float(m), block_batch)
    # TODO(synk): for extremely large C (row exceeds VMEM) add an online-softmax
    # class-chunked grid axis; full-row tiles are fine for all realistic C here.
    return _amsoftmax_general(cosine, labels, float(s), float(m), block_batch)


# --------------------------------------------------------------------------
# Pure-JAX reference (literal PyTorch semantics) + self-test
# --------------------------------------------------------------------------
def _reference(cosine, labels, s=30.0, m=0.4):
    # scatter_(1, labels, 1) into a ones tensor is a no-op -> phi = cosine - m.
    logits = s * (cosine.astype(jnp.float32) - m)
    logprob = jax.nn.log_softmax(logits, axis=1)
    return -jnp.mean(jnp.take_along_axis(logprob, labels[:, None], axis=1))


if __name__ == "__main__":
    key = jax.random.PRNGKey(0)
    k1, k2, k3, k4, k5, k6 = jax.random.split(key, 6)

    # 1) AASIST2 shape: 2-class spoof detection, batch of 8 (lane-dense path).
    B, C = 8, 2
    cosine = jnp.tanh(jax.random.normal(k1, (B, C), dtype=jnp.float32))
    labels = jax.random.randint(k2, (B,), 0, C, dtype=jnp.int32)
    loss = amsoftmax_loss(cosine, labels, s=30.0, m=0.4)
    jax.block_until_ready(loss)
    ref = _reference(cosine, labels, 30.0, 0.4)
    assert jnp.allclose(loss, ref, atol=1e-4, rtol=1e-4), (loss, ref)

    # 2) Multi-tile lane-dense path with batch padding + masking.
    B2, C2 = 300, 2
    cos2 = jnp.tanh(jax.random.normal(k3, (B2, C2), dtype=jnp.float32))
    lab2 = jax.random.randint(k4, (B2,), 0, C2, dtype=jnp.int32)
    loss2 = amsoftmax_loss(cos2, lab2, s=30.0, m=0.4, block_batch=128)
    jax.block_until_ready(loss2)
    ref2 = _reference(cos2, lab2, 30.0, 0.4)
    assert jnp.allclose(loss2, ref2, atol=1e-4, rtol=1e-4), (loss2, ref2)

    # 3) General (large-C) row path with a ragged final batch tile.
    B3, C3 = 40, 256
    cos3 = jnp.tanh(jax.random.normal(k5, (B3, C3), dtype=jnp.float32))
    lab3 = jax.random.randint(k6, (B3,), 0, C3, dtype=jnp.int32)
    loss3 = amsoftmax_loss(cos3, lab3, s=30.0, m=0.4, block_batch=16)
    jax.block_until_ready(loss3)
    ref3 = _reference(cos3, lab3, 30.0, 0.4)
    assert jnp.allclose(loss3, ref3, atol=1e-4, rtol=1e-4), (loss3, ref3)

    print("KERNEL_OK")
</pallas_src>

<mosaic_0001>
module attributes {stable_mosaic.version = 11 : i64} {
  func.func @_amsoftmax_lanes_kernel(%arg0: i32, %arg1: memref<2x128xf32, #tpu.memory_space<vmem>>, %arg2: memref<1x128xi32, #tpu.memory_space<vmem>>, %arg3: memref<1x128xf32, #tpu.memory_space<vmem>>) attributes {dimension_semantics = [#tpu.dimension_semantics<parallel>], iteration_bounds = array<i64: 1>, scalar_prefetch = 0 : i64, scratch_operands = 0 : i64, tpu.core_type = #tpu.core_type<tc>, window_params = [{transform_indices = @transform_0, window_bounds = array<i64: 2, 128>}, {transform_indices = @transform_1, window_bounds = array<i64: 1, 128>}, {transform_indices = @transform_2, window_bounds = array<i64: 1, 128>}]} {
    %c0 = arith.constant 0 : index
    %c0_0 = arith.constant 0 : index
    %0 = vector.load %arg1[%c0, %c0_0] : memref<2x128xf32, #tpu.memory_space<vmem>>, vector<2x128xf32>
    %c0_1 = arith.constant 0 : index
    %c0_2 = arith.constant 0 : index
    %1 = vector.load %arg2[%c0_1, %c0_2] : memref<1x128xi32, #tpu.memory_space<vmem>>, vector<1x128xi32>
    %cst = arith.constant 4.000000e-01 : f32
    %2 = vector.broadcast %cst : f32 to vector<2x128xf32>
    %3 = arith.subf %0, %2 : vector<2x128xf32>
    %cst_3 = arith.constant 3.000000e+01 : f32
    %4 = vector.broadcast %cst_3 : f32 to vector<2x128xf32>
    %5 = arith.mulf %4, %3 : vector<2x128xf32>
    %6 = vector.extract_strided_slice %5 {offsets = [0, 0], sizes = [1, 128], strides = [1, 1]} : vector<2x128xf32> to vector<1x128xf32>
    %7 = vector.extract_strided_slice %5 {offsets = [1, 0], sizes = [1, 128], strides = [1, 1]} : vector<2x128xf32> to vector<1x128xf32>
    %8 = arith.maximumf %6, %7 : vector<1x128xf32>
    %cst_4 = arith.constant 0.000000e+00 : f32
    %9 = vector.broadcast %cst_4 : f32 to vector<1x128xf32>
    %cst_5 = arith.constant 0.000000e+00 : f32
    %10 = vector.broadcast %cst_5 : f32 to vector<1x128xf32>
    %11 = vector.extract_strided_slice %5 {offsets = [0, 0], sizes = [1, 128], strides = [1, 1]} : vector<2x128xf32> to vector<1x128xf32>
    %12 = arith.subf %11, %8 : vector<1x128xf32>
    %13 = math.exp %12 : vector<1x128xf32>
    %14 = arith.addf %9, %13 : vector<1x128xf32>
    %c0_i32 = arith.constant 0 : i32
    %15 = vector.broadcast %c0_i32 : i32 to vector<1x128xi32>
    %16 = arith.cmpi eq, %1, %15 : vector<1x128xi32>
    %cst_6 = arith.constant 0.000000e+00 : f32
    %17 = vector.broadcast %cst_6 : f32 to vector<1x128xf32>
    %18 = arith.select %16, %11, %17 : vector<1x128xi1>, vector<1x128xf32>
    %19 = arith.addf %10, %18 : vector<1x128xf32>
    %20 = vector.extract_strided_slice %5 {offsets = [1, 0], sizes = [1, 128], strides = [1, 1]} : vector<2x128xf32> to vector<1x128xf32>
    %21 = arith.subf %20, %8 : vector<1x128xf32>
    %22 = math.exp %21 : vector<1x128xf32>
    %23 = arith.addf %14, %22 : vector<1x128xf32>
    %c1_i32 = arith.constant 1 : i32
    %24 = vector.broadcast %c1_i32 : i32 to vector<1x128xi32>
    %25 = arith.cmpi eq, %1, %24 : vector<1x128xi32>
    %cst_7 = arith.constant 0.000000e+00 : f32
    %26 = vector.broadcast %cst_7 : f32 to vector<1x128xf32>
    %27 = arith.select %25, %20, %26 : vector<1x128xi1>, vector<1x128xf32>
    %28 = arith.addf %19, %27 : vector<1x128xf32>
    %29 = math.log %23 : vector<1x128xf32>
    %30 = arith.addf %8, %29 : vector<1x128xf32>
    %31 = arith.subf %30, %28 : vector<1x128xf32>
    %c128_i32 = arith.constant 128 : i32
    %32 = arith.muli %arg0, %c128_i32 : i32
    %33 = tpu.iota {dimensions = array<i32: 1>} : vector<1x128xi32>
    %34 = vector.broadcast %32 : i32 to vector<1x128xi32>
    %35 = arith.addi %34, %33 : vector<1x128xi32>
    %c8_i32 = arith.constant 8 : i32
    %36 = vector.broadcast %c8_i32 : i32 to vector<1x128xi32>
    %37 = arith.cmpi slt, %35, %36 : vector<1x128xi32>
    %cst_8 = arith.constant 0.000000e+00 : f32
    %38 = vector.broadcast %cst_8 : f32 to vector<1x128xf32>
    %39 = arith.select %37, %31, %38 : vector<1x128xi1>, vector<1x128xf32>
    %cst_9 = arith.constant dense<0.000000e+00> : vector<1xf32>
    %40 = vector.multi_reduction <add>, %39, %cst_9 [1] : vector<1x128xf32> to vector<1xf32>
    %41 = vector.shape_cast %40 : vector<1xf32> to vector<1x1xf32>
    %42 = vector.shape_cast %41 : vector<1x1xf32> to vector<1x1xf32>
    %43 = vector.broadcast %42 : vector<1x1xf32> to vector<1x128xf32>
    %c0_10 = arith.constant 0 : index
    %c0_11 = arith.constant 0 : index
    %44 = vector.load %arg3[%c0_10, %c0_11] : memref<1x128xf32, #tpu.memory_space<vmem>>, vector<1x128xf32>
    tpu.vector_store %arg3[%c0_10, %c0_11], %43 {strides = array<i32>} : memref<1x128xf32, #tpu.memory_space<vmem>>, vector<1x128xf32>,
    return
  }
  func.func @transform_0(%arg0: i32) -> (i32, i32) {
    %c0_i32 = arith.constant 0 : i32
    %c0_i32_0 = arith.constant 0 : i32
    return %c0_i32, %arg0 : i32, i32
  }
  func.func @transform_1(%arg0: i32) -> (i32, i32) {
    %c0_i32 = arith.constant 0 : i32
    %c0_i32_0 = arith.constant 0 : i32
    return %c0_i32, %arg0 : i32, i32
  }
  func.func @transform_2(%arg0: i32) -> (i32, i32) {
    %c0_i32 = arith.constant 0 : i32
    %c0_i32_0 = arith.constant 0 : i32
    return %c0_i32, %arg0 : i32, i32
  }
}

</mosaic_0001>

<llo_original>
// kernel: tpu_custom_call.1
$region0: #{tpu_custom_call.1}
  #allocation0 [shape = 'u32[]', space=smem, size = 0x4, offset = 0x4, fixed_abs, tag = 'smem constant byte address 0x4 - core index']
  #allocation1 [shape = 'u32[144,128]{1,0:T(1,128)}', space=vmem, size = 0x12000, scoped, tag = 'internal scratch']
  %s0 = inlined_call_operand.hbm [shape: f32[2,128], index: 0, kind: input, shape index: {}]
  %s1 = inlined_call_operand.vmem [shape: s32[1,128], index: 1, kind: input, shape index: {}]
  %s2 = inlined_call_operand.hbm [shape: f32[1,128], index: 2, kind: output, shape index: {}]
  %s3 = sld [smem:[#allocation0]]
  $region22: #{tpu_custom_call.1} parent=0
    _
  %s5 = ssub.s32 1, %s3
  %s6 = scalar_select 0, %s5, %s3
  $region1: #{tpu_custom_call.1} parent=0
    #allocation2 [shape = 'u8[1024]{0}', space=vmem, size = 0x400, scoped, tag = 'input window, operand 0, single buffered']
    #allocation3 [shape = 's32[1]{0}', space=sflag, size = 0x4, scoped, tag = 'scoped memory for tpu_custom_call.1']
    #allocation4 [shape = 's32[1]{0}', space=sflag, size = 0x4, scoped, tag = 'scoped memory for tpu_custom_call.1']
    #allocation5 [shape = 'u8[512]{0}', space=vmem, size = 0x400, scoped, tag = 'output window, operand 0, single buffered']
    %7 = vsyncpa [#allocation3], 0
    %8 = vsyncpa [#allocation4], 0
    // Predicated region
    $region2: #{tpu_custom_call.1} parent=1 // pred_check
      _
    $region3: #{tpu_custom_call.1} parent=1 // pred_check_branch
      %10 = sbr.rel (0) target = $region5
    $region4: #{tpu_custom_call.1} parent=1 // pred_region
      %s12 = ssub.s32 32, 32
      %13 = vsyncadd [#allocation3], %s12
      %s15 = sshll.u32 [#allocation2], 4
      %s16 = int_to_ptr.vmem [resolvable:$true] %s15
      %18 = dma.hbm_to_vmem [thread:$0]  %s0, 32, %s16, [#allocation3]
    $region5: #{tpu_custom_call.1} parent=1 // pred_fallthru
      _
    // Predicated region
    $region6: #{tpu_custom_call.1} parent=1 // pred_check
      _
    $region7: #{tpu_custom_call.1} parent=1 // pred_check_branch
      %20 = sbr.rel (0) target = $region9
    $region8: #{tpu_custom_call.1} parent=1 // pred_region
      _
    $region9: #{tpu_custom_call.1} parent=1 // pred_fallthru
      _
    // Predicated region
    $region10: #{tpu_custom_call.1} parent=1 // pred_check
      _
    $region11: #{tpu_custom_call.1} parent=1 // pred_check_branch
      %22 = sbr.rel (0) target = $region13
    $region12: #{tpu_custom_call.1} parent=1 // pred_region
      %23 = dma.done [#allocation3], 32
    $region13: #{tpu_custom_call.1} parent=1 // pred_fallthru
      _
    %v24 = vld [vmem:[#allocation2] sm:$0x3]
    %v25 = vld [vmem:[%s1] sm:$0x1]
    %v26 = vsub.f32 %v24, 0.4
    %v27 = vmul.f32 %v26, 30.0
    %v29 = vrot.slane %v27, 1
    %v31 = vmax.f32 %v27, %v29
    %v32 = vsub.f32 %v27, %v31
    %v33 = vmul.f32 %v32, 1.442695
    %v34 = vpow.pop %v33
    %v35 = vadd.f32 %v34, 0.0
    %vm36 = vcmp.eq.s32.totalorder %v25, 0
    %v37 = vsel %vm36, %v27, 0.0
    %v38 = vadd.f32 %v37, 0.0
    %v40 = vrot.slane %v31, 7
    %v42 = vsub.f32 %v27, %v40
    %v43 = vmul.f32 %v42, 1.442695
    %v44 = vpow.pop %v43
    %v46 = vrot.slane %v44, 1
    %v48 = vadd.f32 %v35, %v46
    %vm49 = vcmp.eq.s32.totalorder %v25, 1
    %v51 = vunpack.c.l.s4 1966171168
    %v52 = vunpack.c.0.s8 %v51
    %v53 = vlaneseq
    %v54 = vshrl.u32 %v53, 7
    %v55 = vsub.s32 %v52, %v54
    %v56 = vrot.slane %v27, %v55
    %v57 = vcombine.high %v56, %v56
    %v59 = vunpack.c.l.s4 1966171168
    %v60 = vunpack.c.0.s8 %v59
    %v61 = vlaneseq
    %v62 = vshrl.u32 %v61, 7
    %v63 = vsub.s32 %v60, %v62
    %v64 = vrot.slane %v57, %v63
    %v66 = vsel %vm49, %v64, 0.0
    %v67 = vadd.f32 %v38, %v66
    %v68 = vlog2.pop %v48
    %v69 = vmul.f32 %v68, 0.6931472
    %v70 = vadd.f32 %v31, %v69
    %v71 = vsub.f32 %v70, %v67
    %s72 = smul.u32 0, 128
    %v73 = vlaneseq
    %v74 = vand.u32 %v73, 127
    %v75 = vstv %s72
    %v76 = vadd.s32 %v75, %v74
    %vm77 = vcmp.lt.s32.totalorder %v76, 8
    %v78 = vsel %vm77, %v71, 0.0
    %vm79 = vcmask 1040384
    %v80 = vsel %vm79, %v78, 0.0
    %81 = vadd.xlane.f32.xlu0 %v80
    %v82 = vpop.xlane.xlu0 %81
    %83 = vst [vmem:[#allocation5] sm:$0x1] %v82
    // Predicated region
    $region14: #{tpu_custom_call.1} parent=1 // pred_check
      _
    $region15: #{tpu_custom_call.1} parent=1 // pred_check_branch
      %85 = sbr.rel (0) target = $region17
    $region16: #{tpu_custom_call.1} parent=1 // pred_region
      %s87 = ssub.s32 16, 16
      %88 = vsyncadd [#allocation4], %s87
      %s90 = sshll.u32 [#allocation5], 4
      %s91 = int_to_ptr.vmem [resolvable:$true] %s90
      %93 = dma.vmem_to_hbm [thread:$0]  %s91, 16, %s2, [#allocation4]
    $region17: #{tpu_custom_call.1} parent=1 // pred_fallthru
      _
    // Predicated region
    $region18: #{tpu_custom_call.1} parent=1 // pred_check
      _
    $region19: #{tpu_custom_call.1} parent=1 // pred_check_branch
      %95 = sbr.rel (0) target = $region21
    $region20: #{tpu_custom_call.1} parent=1 // pred_region
      %96 = dma.done [#allocation4], 16
    $region21: #{tpu_custom_call.1} parent=1 // pred_fallthru
      _
    %97 = vsyncpa [#allocation3], 1
    %98 = vsyncpa [#allocation4], 1

</llo_original>
